<compile_context>
chip_gen: v7x
topology: tpu7x:2x2x1
jax: 0.10.0
libtpu: 0.0.40
codegen_flags: <defaults>
</compile_context>

<pallas_src>
import jax
import jax.numpy as jnp
from jax.experimental import pallas as pl
from jax.experimental.pallas import tpu as pltpu


_TL_CAP = 2048   # lane-tile cap (multiple of 128)
_TB_CAP = 256    # sublane-tile cap (multiple of 8)


def _round_up(x, m):
    return ((x + m - 1) // m) * m


def _pick_tb(B):
    """Batch tile: multiple of 8, <= B, >= 2 blocks when B > 8 (v7x dual-TC)."""
    if B <= 8:
        return B                       # full-dim block (allowed even if < 8)
    tb = min((B // 8) * 8, _TB_CAP)    # multiple of 8, never larger than B
    if pl.cdiv(B, tb) < 2:
        half = _round_up((B + 1) // 2, 8)
        tb = min(max(8, half), (B // 8) * 8)
    return tb


def _make_kernel(tb, tl, L, lane_chunks, col_mask_needed):
    """lane_chunks = tl // 128 if tl % 128 == 0 else 0 (selects accumulator layout)."""

    def kernel(x_ref, t_ref, m_ref, out_ref, num_acc, den_acc):
        k = pl.program_id(1)

        @pl.when(k == 0)
        def _():
            num_acc[...] = jnp.zeros_like(num_acc)
            den_acc[...] = jnp.zeros_like(den_acc)

        x = x_ref[...].astype(jnp.float32)
        t = t_ref[...].astype(jnp.float32)
        m = m_ref[...].astype(jnp.float32)

        # Numerically-stable binary_cross_entropy_with_logits (reduction='none'),
        # weighted by mask:  max(x, 0) - x*t + log1p(exp(-|x|))
        bce = jnp.maximum(x, 0.0) - x * t + jnp.log1p(jnp.exp(-jnp.abs(x)))
        res = m * bce                                        # (tb, tl)

        if col_mask_needed:
            # Ragged last L tile: columns >= L hold garbage (possibly NaN) reads.
            # jnp.where (not a multiply) so garbage NaNs are killed.
            col = jax.lax.broadcasted_iota(jnp.int32, (tb, tl), 1) + k * tl
            ok = col < L
            res = jnp.where(ok, res, 0.0)
            m = jnp.where(ok, m, 0.0)

        if lane_chunks:
            # Lane-dense accumulation into (tb, 128): no per-step cross-lane
            # reduce (XLU) and no per-step narrow store.
            num_part = res[:, 0:128]
            den_part = m[:, 0:128]
            for c in range(1, lane_chunks):
                num_part = num_part + res[:, c * 128:(c + 1) * 128]
                den_part = den_part + m[:, c * 128:(c + 1) * 128]
            num_acc[...] += num_part
            den_acc[...] += den_part
        else:
            num_acc[...] += jnp.sum(res, axis=1, keepdims=True)   # (tb, 1)
            den_acc[...] += jnp.sum(m, axis=1, keepdims=True)     # (tb, 1)

        # Single cross-lane reduce + single divide + single (tb, 1) store, only
        # on the last reduction step.
        @pl.when(k == pl.num_programs(1) - 1)
        def _():
            if lane_chunks:
                num = jnp.sum(num_acc[...], axis=1, keepdims=True)
                den = jnp.sum(den_acc[...], axis=1, keepdims=True)
            else:
                num = num_acc[...]
                den = den_acc[...]
            out_ref[...] = num / den     # == res.mean(1) * L / mask.sum(1)

    return kernel


def sigmoid_binary_cross_entropy(inputs, targets, mask, *, tb=None, tl=None):
    """Returns the scalar loss (float32).  inputs/targets/mask: (batch, len)."""
    assert inputs.shape == targets.shape == mask.shape
    B, L = inputs.shape

    # Match the PyTorch module's .float() casts (no-ops when already f32).
    x = inputs.astype(jnp.float32)
    t = targets.astype(jnp.float32)
    m = mask.astype(jnp.float32)

    if tb is None:
        tb = _pick_tb(B)
    if tl is None:
        tl = L if L <= _TL_CAP else _TL_CAP   # full-L tile when it fits (no padding)

    grid = (pl.cdiv(B, tb), pl.cdiv(L, tl))

    lane_chunks = tl // 128 if (tl % 128 == 0) else 0
    col_mask_needed = (L % tl) != 0
    acc_w = 128 if lane_chunks else 1

    kernel = _make_kernel(tb=tb, tl=tl, L=L,
                          lane_chunks=lane_chunks,
                          col_mask_needed=col_mask_needed)

    per_row = pl.pallas_call(
        kernel,
        out_shape=jax.ShapeDtypeStruct((B, 1), jnp.float32),
        grid_spec=pltpu.PrefetchScalarGridSpec(
            num_scalar_prefetch=0,
            grid=grid,
            in_specs=[
                pl.BlockSpec((tb, tl), lambda i, k: (i, k)),
                pl.BlockSpec((tb, tl), lambda i, k: (i, k)),
                pl.BlockSpec((tb, tl), lambda i, k: (i, k)),
            ],
            out_specs=pl.BlockSpec((tb, 1), lambda i, k: (i, 0)),
            scratch_shapes=[
                pltpu.VMEM((tb, acc_w), jnp.float32),   # per-row weighted-BCE partials
                pltpu.VMEM((tb, acc_w), jnp.float32),   # per-row mask-sum partials
            ],
        ),
        compiler_params=pltpu.CompilerParams(
            dimension_semantics=("parallel", "arbitrary"),
            vmem_limit_bytes=32 * 1024 * 1024,   # safe on v7x; v5e/v6e have headroom
        ),
        cost_estimate=pl.CostEstimate(
            flops=10 * B * L,
            transcendentals=2 * B * L,
            bytes_accessed=3 * B * L * 4 + B * 4,
        ),
    )(x, t, m)

    # Final batch mean over per-row losses (output is exactly (B, 1): no padded
    # rows exist, so no NaN from padding; mask.sum==0 rows NaN as in PyTorch).
    return jnp.mean(per_row)


def _reference(inputs, targets, mask):
    x = inputs.astype(jnp.float32)
    t = targets.astype(jnp.float32)
    m = mask.astype(jnp.float32)
    res = m * (jnp.maximum(x, 0.0) - x * t + jnp.log1p(jnp.exp(-jnp.abs(x))))
    L = m.shape[1]
    loss = res.mean(axis=1) * L / jnp.sum(m, axis=1)
    return loss.mean()


if __name__ == "__main__":
    key = jax.random.PRNGKey(0)
    k1, k2, k3 = jax.random.split(key, 3)

    # (batch_size, len) — skip-gram centers x (contexts + negatives).
    # Deliberately NOT tile-aligned to exercise partial edge blocks without padding.
    B, L = 20, 300
    inputs = jax.random.normal(k1, (B, L), dtype=jnp.float32)
    targets = (jax.random.uniform(k2, (B, L)) > 0.5).astype(jnp.float32)
    # Padding mask: first `valid` entries per row are 1, rest 0; every row has
    # at least one valid element (mask.sum(1) == 0 would be NaN, as in PyTorch).
    valid = jax.random.randint(k3, (B, 1), minval=L // 4, maxval=L + 1)
    mask = (jnp.arange(L)[None, :] < valid).astype(jnp.float32)

    # Default tiling: tl = L (single reduction step), two batch blocks.
    loss_default = jax.block_until_ready(
        sigmoid_binary_cross_entropy(inputs, targets, mask))

    # Forced small tiles: exercises a (2, 3) grid with a partial batch tile, a
    # ragged last L tile (column masking), and the lane-dense accumulator path.
    loss_tiled = jax.block_until_ready(
        sigmoid_binary_cross_entropy(inputs, targets, mask, tb=16, tl=128))

    ref = _reference(inputs, targets, mask)
    assert jnp.allclose(loss_default, ref, rtol=1e-5, atol=1e-5), (loss_default, ref)
    assert jnp.allclose(loss_tiled, ref, rtol=1e-5, atol=1e-5), (loss_tiled, ref)

    print("KERNEL_OK")
</pallas_src>

<mosaic_0001>
module attributes {stable_mosaic.version = 11 : i64} {
  func.func @kernel(%arg0: i32, %arg1: i32, %arg2: memref<16x300xf32, #tpu.memory_space<vmem>>, %arg3: memref<16x300xf32, #tpu.memory_space<vmem>>, %arg4: memref<16x300xf32, #tpu.memory_space<vmem>>, %arg5: memref<16x1xf32, #tpu.memory_space<vmem>>, %arg6: memref<16x1xf32, #tpu.memory_space<vmem>>, %arg7: memref<16x1xf32, #tpu.memory_space<vmem>>) attributes {dimension_semantics = [#tpu.dimension_semantics<parallel>, #tpu.dimension_semantics<arbitrary>], iteration_bounds = array<i64: 2, 1>, scalar_prefetch = 0 : i64, scratch_operands = 2 : i64, tpu.core_type = #tpu.core_type<tc>, window_params = [{transform_indices = @transform_0, window_bounds = array<i64: 16, 300>}, {transform_indices = @transform_1, window_bounds = array<i64: 16, 300>}, {transform_indices = @transform_2, window_bounds = array<i64: 16, 300>}, {transform_indices = @transform_3, window_bounds = array<i64: 16, 1>}]} {
    %c0_i32 = arith.constant 0 : i32
    %0 = arith.cmpi eq, %arg1, %c0_i32 : i32
    %1 = arith.extui %0 : i1 to i32
    %c0_i32_0 = arith.constant 0 : i32
    %2 = arith.cmpi ne, %1, %c0_i32_0 : i32
    scf.if %2 {
      %cst_19 = arith.constant 0.000000e+00 : f32
      %30 = vector.broadcast %cst_19 : f32 to vector<16x1xf32>
      %c0_20 = arith.constant 0 : index
      %c0_21 = arith.constant 0 : index
      %31 = vector.load %arg6[%c0_20, %c0_21] : memref<16x1xf32, #tpu.memory_space<vmem>>, vector<16x1xf32>
      tpu.vector_store %arg6[%c0_20, %c0_21], %30 {strides = array<i32>} : memref<16x1xf32, #tpu.memory_space<vmem>>, vector<16x1xf32>,
      %cst_22 = arith.constant 0.000000e+00 : f32
      %32 = vector.broadcast %cst_22 : f32 to vector<16x1xf32>
      %c0_23 = arith.constant 0 : index
      %c0_24 = arith.constant 0 : index
      %33 = vector.load %arg7[%c0_23, %c0_24] : memref<16x1xf32, #tpu.memory_space<vmem>>, vector<16x1xf32>
      tpu.vector_store %arg7[%c0_23, %c0_24], %32 {strides = array<i32>} : memref<16x1xf32, #tpu.memory_space<vmem>>, vector<16x1xf32>,
    } else {
    }
    %c0 = arith.constant 0 : index
    %c0_1 = arith.constant 0 : index
    %3 = vector.load %arg2[%c0, %c0_1] : memref<16x300xf32, #tpu.memory_space<vmem>>, vector<16x300xf32>
    %c0_2 = arith.constant 0 : index
    %c0_3 = arith.constant 0 : index
    %4 = vector.load %arg3[%c0_2, %c0_3] : memref<16x300xf32, #tpu.memory_space<vmem>>, vector<16x300xf32>
    %c0_4 = arith.constant 0 : index
    %c0_5 = arith.constant 0 : index
    %5 = vector.load %arg4[%c0_4, %c0_5] : memref<16x300xf32, #tpu.memory_space<vmem>>, vector<16x300xf32>
    %cst = arith.constant 0.000000e+00 : f32
    %6 = vector.broadcast %cst : f32 to vector<16x300xf32>
    %7 = arith.maximumf %3, %6 : vector<16x300xf32>
    %8 = arith.mulf %3, %4 : vector<16x300xf32>
    %9 = arith.subf %7, %8 : vector<16x300xf32>
    %10 = math.absf %3 : vector<16x300xf32>
    %cst_6 = arith.constant 0.000000e+00 : f32
    %11 = vector.broadcast %cst_6 : f32 to vector<16x300xf32>
    %12 = arith.subf %11, %10 : vector<16x300xf32>
    %13 = math.exp %12 : vector<16x300xf32>
    %14 = math.log1p %13 : vector<16x300xf32>
    %15 = arith.addf %9, %14 : vector<16x300xf32>
    %16 = arith.mulf %5, %15 : vector<16x300xf32>
    %c0_7 = arith.constant 0 : index
    %c0_8 = arith.constant 0 : index
    %17 = vector.load %arg6[%c0_7, %c0_8] : memref<16x1xf32, #tpu.memory_space<vmem>>, vector<16x1xf32>
    %cst_9 = arith.constant dense<0.000000e+00> : vector<16xf32>
    %18 = vector.multi_reduction <add>, %16, %cst_9 [1] : vector<16x300xf32> to vector<16xf32>
    %19 = vector.shape_cast %18 : vector<16xf32> to vector<16x1xf32>
    %20 = arith.addf %17, %19 : vector<16x1xf32>
    %c0_10 = arith.constant 0 : index
    %c0_11 = arith.constant 0 : index
    %21 = vector.load %arg6[%c0_10, %c0_11] : memref<16x1xf32, #tpu.memory_space<vmem>>, vector<16x1xf32>
    tpu.vector_store %arg6[%c0_10, %c0_11], %20 {strides = array<i32>} : memref<16x1xf32, #tpu.memory_space<vmem>>, vector<16x1xf32>,
    %c0_12 = arith.constant 0 : index
    %c0_13 = arith.constant 0 : index
    %22 = vector.load %arg7[%c0_12, %c0_13] : memref<16x1xf32, #tpu.memory_space<vmem>>, vector<16x1xf32>
    %cst_14 = arith.constant dense<0.000000e+00> : vector<16xf32>
    %23 = vector.multi_reduction <add>, %5, %cst_14 [1] : vector<16x300xf32> to vector<16xf32>
    %24 = vector.shape_cast %23 : vector<16xf32> to vector<16x1xf32>
    %25 = arith.addf %22, %24 : vector<16x1xf32>
    %c0_15 = arith.constant 0 : index
    %c0_16 = arith.constant 0 : index
    %26 = vector.load %arg7[%c0_15, %c0_16] : memref<16x1xf32, #tpu.memory_space<vmem>>, vector<16x1xf32>
    tpu.vector_store %arg7[%c0_15, %c0_16], %25 {strides = array<i32>} : memref<16x1xf32, #tpu.memory_space<vmem>>, vector<16x1xf32>,
    %c0_i32_17 = arith.constant 0 : i32
    %27 = arith.cmpi eq, %arg1, %c0_i32_17 : i32
    %28 = arith.extui %27 : i1 to i32
    %c0_i32_18 = arith.constant 0 : i32
    %29 = arith.cmpi ne, %28, %c0_i32_18 : i32
    scf.if %29 {
      %c0_19 = arith.constant 0 : index
      %c0_20 = arith.constant 0 : index
      %30 = vector.load %arg6[%c0_19, %c0_20] : memref<16x1xf32, #tpu.memory_space<vmem>>, vector<16x1xf32>
      %c0_21 = arith.constant 0 : index
      %c0_22 = arith.constant 0 : index
      %31 = vector.load %arg7[%c0_21, %c0_22] : memref<16x1xf32, #tpu.memory_space<vmem>>, vector<16x1xf32>
      %32 = arith.divf %30, %31 : vector<16x1xf32>
      %c0_23 = arith.constant 0 : index
      %c0_24 = arith.constant 0 : index
      %33 = vector.load %arg5[%c0_23, %c0_24] : memref<16x1xf32, #tpu.memory_space<vmem>>, vector<16x1xf32>
      tpu.vector_store %arg5[%c0_23, %c0_24], %32 {strides = array<i32>} : memref<16x1xf32, #tpu.memory_space<vmem>>, vector<16x1xf32>,
    } else {
    }
    return
  }
  func.func @transform_0(%arg0: i32, %arg1: i32) -> (i32, i32) {
    %c0_i32 = arith.constant 0 : i32
    return %arg0, %arg1 : i32, i32
  }
  func.func @transform_1(%arg0: i32, %arg1: i32) -> (i32, i32) {
    %c0_i32 = arith.constant 0 : i32
    return %arg0, %arg1 : i32, i32
  }
  func.func @transform_2(%arg0: i32, %arg1: i32) -> (i32, i32) {
    %c0_i32 = arith.constant 0 : i32
    return %arg0, %arg1 : i32, i32
  }
  func.func @transform_3(%arg0: i32, %arg1: i32) -> (i32, i32) {
    %c0_i32 = arith.constant 0 : i32
    %c0_i32_0 = arith.constant 0 : i32
    return %arg0, %c0_i32 : i32, i32
  }
}

</mosaic_0001>

<llo_original>
// kernel: tpu_custom_call.1
$region0: #{tpu_custom_call.1}
  #allocation0 [shape = 'u32[]', space=smem, size = 0x4, offset = 0x4, fixed_abs, tag = 'smem constant byte address 0x4 - core index']
  #allocation1 [shape = 'u32[144,128]{1,0:T(1,128)}', space=vmem, size = 0x12000, scoped, tag = 'internal scratch']
  #allocation2 [shape = 'f32[16,1]{1,0:T(8,128)}', space=vmem, size = 0x2000, scoped, tag = 'scratch operand']
  #allocation3 [shape = 'f32[16,1]{1,0:T(8,128)}', space=vmem, size = 0x2000, scoped, tag = 'scratch operand']
  %s0 = inlined_call_operand.hbm [shape: f32[20,300], index: 0, kind: input, shape index: {}]
  %s1 = inlined_call_operand.hbm [shape: f32[20,300], index: 1, kind: input, shape index: {}]
  %s2 = inlined_call_operand.hbm [shape: f32[20,300], index: 2, kind: input, shape index: {}]
  %s3 = inlined_call_operand.vmem [shape: f32[20,1], index: 3, kind: output, shape index: {}]
  %s4 = sld [smem:[#allocation0]]
  $region113: #{tpu_custom_call.1} parent=0
    _
  %s6 = ssub.s32 1, %s4
  %s7 = scalar_select 0, %s6, %s4
  $region1: #{tpu_custom_call.1} parent=0
    #allocation4 [shape = 'u8[49152]{0}', space=vmem, size = 0xc000, scoped, tag = 'input window, operand 0']
    #allocation5 [shape = 's32[2]{0}', space=sflag, size = 0x8, scoped, tag = 'scoped memory for tpu_custom_call.1']
    #allocation6 [shape = 'u8[49152]{0}', space=vmem, size = 0xc000, scoped, tag = 'input window, operand 1']
    #allocation7 [shape = 's32[2]{0}', space=sflag, size = 0x8, scoped, tag = 'scoped memory for tpu_custom_call.1']
    #allocation8 [shape = 'u8[49152]{0}', space=vmem, size = 0xc000, scoped, tag = 'input window, operand 2']
    #allocation9 [shape = 'u8[16384]{0}', space=vmem, size = 0x4000, scoped, tag = 'output window, operand 0']
    %8 = vsyncpa [#allocation5], 0
    %s9 = scalar_lea.sflag [#allocation5], 1
    %10 = vsyncpa %s9, 0
    %11 = vsyncpa [#allocation7], 0
    %s12 = scalar_lea.sflag [#allocation7], 1
    %13 = vsyncpa %s12, 0
    loop: start=0, step=1, limit=4
    $region2: #{tpu_custom_call.1} parent=1 // loop_pre_header
      _
    $region3: #{tpu_custom_call.1} parent=1 // loop_header
      %s15 = sphi 0, %s19
      %p16 = scmp.ge.s32.totalorder %s15, 4
      %s22 = sphi 0, %s34
      %s23 = sphi 0, %s30
      %s24 = sphi 0, %s22
      %s25 = sphi 0, %s23
      %s26 = sphi 0, %s24
      %s27 = sphi 0, %s25
      %s39 = sphi 0, %s41
      %s42 = sphi 0, %s39
      %s43 = sphi 0, %s42
      %s59 = sphi 0, %s43
      %s67 = sphi 0, %s69
      %s70 = sphi 0, %s67
      %s71 = sphi 0, %s70
      %s87 = sphi 0, %s71
      %s95 = sphi 0, %s97
      %s98 = sphi 0, %s95
      %s99 = sphi 0, %s98
      %s115 = sphi 0, %s99
      %s121 = sphi 0, %s123
      %s124 = sphi 0, %s121
      %s125 = sphi 0, %s124
      %s141 = sphi 0, %s125
    $region4: #{tpu_custom_call.1} parent=1 // loop_header_branch
      %18 = sbr.rel (%p16) target = $region8
    $region5: #{tpu_custom_call.1} parent=1 // loop_body
      %s20 = ssub.s32 %s15, 1
      %s21 = ssub.s32 %s15, 2
      %s28 = sadd.s32 1, %s23
      %p29 = scmp.ge.s32.totalorder %s28, 1
      %s30 = scalar_select %p29, 0, %s28
      %s31 = sadd.s32 1, %s22
      %s32 = scalar_select %p29, %s31, %s22
      %p33 = scmp.ge.s32.totalorder %s32, 2
      %s34 = scalar_select %p33, 0, %s32
      %s35 = ssub.s32 %s22, %s34
      %s36 = ssub.s32 %s23, %s30
      %s37 = sor.u32 %s35, %s36
      %p38 = scmp.eq.s32.totalorder %s37, 0
      %s40 = sadd.s32 %s39, 1
      %s41 = scalar_select %p38, %s39, %s40
      %p44 = pneg %p38
      %p45 = scmp.eq.s32.totalorder %s15, 1
      %p46 = por %p44, %p45
      %p47 = scmp.ne.s32.totalorder %s39, %s42
      %p48 = scmp.eq.s32.totalorder %s15, 0
      %p49 = por %p47, %p48
      %p50 = scmp.ne.s32.totalorder %s39, %s42
      %p51 = scmp.eq.s32.totalorder %s20, 1
      %p52 = por %p50, %p51
      %p53 = scmp.ne.s32.totalorder %s42, %s43
      %p54 = scmp.eq.s32.totalorder %s20, 0
      %p55 = por %p53, %p54
      %p56 = scmp.ne.s32.totalorder %s42, %s43
      %p57 = scmp.eq.s32.totalorder %s21, 1
      %p58 = por %p56, %p57
      %p60 = scmp.ne.s32.totalorder %s43, %s59
      %p61 = scmp.eq.s32.totalorder %s21, 0
      %p62 = por %p60, %p61
      %s63 = ssub.s32 %s22, %s34
      %s64 = ssub.s32 %s23, %s30
      %s65 = sor.u32 %s63, %s64
      %p66 = scmp.eq.s32.totalorder %s65, 0
      %s68 = sadd.s32 %s67, 1
      %s69 = scalar_select %p66, %s67, %s68
      %p72 = pneg %p66
      %p73 = scmp.eq.s32.totalorder %s15, 1
      %p74 = por %p72, %p73
      %p75 = scmp.ne.s32.totalorder %s67, %s70
      %p76 = scmp.eq.s32.totalorder %s15, 0
      %p77 = por %p75, %p76
      %p78 = scmp.ne.s32.totalorder %s67, %s70
      %p79 = scmp.eq.s32.totalorder %s20, 1
      %p80 = por %p78, %p79
      %p81 = scmp.ne.s32.totalorder %s70, %s71
      %p82 = scmp.eq.s32.totalorder %s20, 0
      %p83 = por %p81, %p82
      %p84 = scmp.ne.s32.totalorder %s70, %s71
      %p85 = scmp.eq.s32.totalorder %s21, 1
      %p86 = por %p84, %p85
      %p88 = scmp.ne.s32.totalorder %s71, %s87
      %p89 = scmp.eq.s32.totalorder %s21, 0
      %p90 = por %p88, %p89
      %s91 = ssub.s32 %s22, %s34
      %s92 = ssub.s32 %s23, %s30
      %s93 = sor.u32 %s91, %s92
      %p94 = scmp.eq.s32.totalorder %s93, 0
      %s96 = sadd.s32 %s95, 1
      %s97 = scalar_select %p94, %s95, %s96
      %p100 = pneg %p94
      %p101 = scmp.eq.s32.totalorder %s15, 1
      %p102 = por %p100, %p101
      %p103 = scmp.ne.s32.totalorder %s95, %s98
      %p104 = scmp.eq.s32.totalorder %s15, 0
      %p105 = por %p103, %p104
      %p106 = scmp.ne.s32.totalorder %s95, %s98
      %p107 = scmp.eq.s32.totalorder %s20, 1
      %p108 = por %p106, %p107
      %p109 = scmp.ne.s32.totalorder %s98, %s99
      %p110 = scmp.eq.s32.totalorder %s20, 0
      %p111 = por %p109, %p110
      %p112 = scmp.ne.s32.totalorder %s98, %s99
      %p113 = scmp.eq.s32.totalorder %s21, 1
      %p114 = por %p112, %p113
      %p116 = scmp.ne.s32.totalorder %s99, %s115
      %p117 = scmp.eq.s32.totalorder %s21, 0
      %p118 = por %p116, %p117
      %s119 = ssub.s32 %s22, %s34
      %p120 = scmp.eq.s32.totalorder %s119, 0
      %s122 = sadd.s32 %s121, 1
      %s123 = scalar_select %p120, %s121, %s122
      %p126 = pneg %p120
      %p127 = scmp.eq.s32.totalorder %s15, 1
      %p128 = por %p126, %p127
      %p129 = scmp.ne.s32.totalorder %s121, %s124
      %p130 = scmp.eq.s32.totalorder %s15, 0
      %p131 = por %p129, %p130
      %p132 = scmp.ne.s32.totalorder %s121, %s124
      %p133 = scmp.eq.s32.totalorder %s20, 1
      %p134 = por %p132, %p133
      %p135 = scmp.ne.s32.totalorder %s124, %s125
      %p136 = scmp.eq.s32.totalorder %s20, 0
      %p137 = por %p135, %p136
      %p138 = scmp.ne.s32.totalorder %s124, %s125
      %p139 = scmp.eq.s32.totalorder %s21, 1
      %p140 = por %p138, %p139
      %p142 = scmp.ne.s32.totalorder %s125, %s141
      %p143 = scmp.eq.s32.totalorder %s21, 0
      %p144 = por %p142, %p143
      %p145 = scmp.le.s32.totalorder 1, %s15
      %p146 = scmp.lt.s32.totalorder %s15, 3
      %p147 = pnand %p145, %p146
      %p148 = pneg %p147
      // Predicated region
      $region9: #{tpu_custom_call.1} parent=5 // pred_check
        _
      $region10: #{tpu_custom_call.1} parent=5 // pred_check_branch
        %150 = sbr.rel (%p147) target = $region12
      $region11: #{tpu_custom_call.1} parent=5 // pred_region
        %s151 = ssub.s32 %s15, 1
      $region12: #{tpu_custom_call.1} parent=5 // pred_fallthru
        _
      %p152 = scmp.lt.s32.totalorder %s15, 2
      // Predicated region
      $region13: #{tpu_custom_call.1} parent=5 // pred_check
        %p153 = pneg %p152
      $region14: #{tpu_custom_call.1} parent=5 // pred_check_branch
        %155 = sbr.rel (%p153) target = $region16
      $region15: #{tpu_custom_call.1} parent=5 // pred_region
        // Predicated region
        $region17: #{tpu_custom_call.1} parent=15 // pred_check
          %p156 = pneg %p49
        $region18: #{tpu_custom_call.1} parent=15 // pred_check_branch
          %158 = sbr.rel (%p156) target = $region20
        $region19: #{tpu_custom_call.1} parent=15 // pred_region
          %s159 = sand.u32 %s39, 1
          %s160 = scalar_lea.sflag [#allocation5], %s159
          %s161 = sand.u32 %s39, 1
          %s162 = smul.addr %s161, 48
          %s163 = scalar_lea.vmem [#allocation4], %s162
          %s164 = smul.u32 2, %s22
          %s165 = smul.u32 3, %s23
          %s166 = ssub.s32 3, %s164
          %p167 = scmp.lt.s32.totalorder %s166, 2
          %s168 = scalar_select %p167, %s166, 2
          %s169 = smul.u32 128, %s168
          %s170 = smul.u32 %s169, 3
          %s172 = ssub.s32 768, %s170
          %173 = vsyncadd %s160, %s172
          %p174 = scmp.ne.s32.totalorder 0, %s170
          %s175 = smul.addr %s164, 3
          %s176 = sadd.s32 %s165, %s175
          %s177 = smul.addr %s176, 128
          %s178 = scalar_lea.hbm %s0, %s177
          %s179 = smul.u32 24, %s168
          %s180 = sshll.u32 %s163, 4
          %s181 = int_to_ptr.vmem [resolvable:$true] %s180
          %s182 = sshll.u32 %s179, 4
          %186 = dma.hbm_to_vmem [thread:$0]  (%p174), %s178, %s182, %s181, %s160, 384, 384, 24
        $region20: #{tpu_custom_call.1} parent=15 // pred_fallthru
          _
        // Predicated region
        $region21: #{tpu_custom_call.1} parent=15 // pred_check
          %p187 = pneg %p77
        $region22: #{tpu_custom_call.1} parent=15 // pred_check_branch
          %189 = sbr.rel (%p187) target = $region24
        $region23: #{tpu_custom_call.1} parent=15 // pred_region
          %s190 = sand.u32 %s15, 1
          %s191 = scalar_lea.sflag [#allocation7], %s190
          %s192 = sand.u32 %s67, 1
          %s193 = smul.addr %s192, 48
          %s194 = scalar_lea.vmem [#allocation6], %s193
          %s195 = smul.u32 2, %s22
          %s196 = smul.u32 3, %s23
          %s197 = ssub.s32 3, %s195
          %p198 = scmp.lt.s32.totalorder %s197, 2
          %s199 = scalar_select %p198, %s197, 2
          %s200 = smul.u32 128, %s199
          %s201 = smul.u32 %s200, 3
          %s203 = ssub.s32 768, %s201
          %204 = vsyncadd %s191, %s203
          %p205 = scmp.ne.s32.totalorder 0, %s201
          %s206 = smul.addr %s195, 3
          %s207 = sadd.s32 %s196, %s206
          %s208 = smul.addr %s207, 128
          %s209 = scalar_lea.hbm %s1, %s208
          %s210 = smul.u32 24, %s199
          %s211 = sshll.u32 %s194, 4
          %s212 = int_to_ptr.vmem [resolvable:$true] %s211
          %s213 = sshll.u32 %s210, 4
          %217 = dma.hbm_to_vmem [thread:$0]  (%p205), %s209, %s213, %s212, %s191, 384, 384, 24
        $region24: #{tpu_custom_call.1} parent=15 // pred_fallthru
          _
        // Predicated region
        $region25: #{tpu_custom_call.1} parent=15 // pred_check
          %p218 = pneg %p105
        $region26: #{tpu_custom_call.1} parent=15 // pred_check_branch
          %220 = sbr.rel (%p218) target = $region28
        $region27: #{tpu_custom_call.1} parent=15 // pred_region
          %s221 = sand.u32 %s15, 1
          %s222 = scalar_lea.sflag [#allocation7], %s221
          %s223 = sand.u32 %s95, 1
          %s224 = smul.addr %s223, 48
          %s225 = scalar_lea.vmem [#allocation8], %s224
          %s226 = smul.u32 2, %s22
          %s227 = smul.u32 3, %s23
          %s228 = ssub.s32 3, %s226
          %p229 = scmp.lt.s32.totalorder %s228, 2
          %s230 = scalar_select %p229, %s228, 2
          %s231 = smul.u32 128, %s230
          %s232 = smul.u32 %s231, 3
          %s234 = ssub.s32 768, %s232
          %235 = vsyncadd %s222, %s234
          %p236 = scmp.ne.s32.totalorder 0, %s232
          %s237 = smul.addr %s226, 3
          %s238 = sadd.s32 %s227, %s237
          %s239 = smul.addr %s238, 128
          %s240 = scalar_lea.hbm %s2, %s239
          %s241 = smul.u32 24, %s230
          %s242 = sshll.u32 %s225, 4
          %s243 = int_to_ptr.vmem [resolvable:$true] %s242
          %s244 = sshll.u32 %s241, 4
          %248 = dma.hbm_to_vmem [thread:$0]  (%p236), %s240, %s244, %s243, %s222, 384, 384, 24
        $region28: #{tpu_custom_call.1} parent=15 // pred_fallthru
          _
      $region16: #{tpu_custom_call.1} parent=5 // pred_fallthru
        _
      %p249 = scmp.le.s32.totalorder 1, %s15
      %p250 = scmp.lt.s32.totalorder %s15, 3
      %p251 = pnand %p249, %p250
      %p252 = pneg %p251
      // Predicated region
      $region29: #{tpu_custom_call.1} parent=5 // pred_check
        _
      $region30: #{tpu_custom_call.1} parent=5 // pred_check_branch
        %254 = sbr.rel (%p251) target = $region32
      $region31: #{tpu_custom_call.1} parent=5 // pred_region
        %s255 = ssub.s32 %s15, 1
        %s256 = sand.u32 %s42, 1
        %s257 = scalar_lea.sflag [#allocation5], %s256
        %s258 = sand.u32 %s42, 1
        %s259 = smul.addr %s258, 48
        %s260 = scalar_lea.vmem [#allocation4], %s259
        // Predicated region
        $region33: #{tpu_custom_call.1} parent=31 // pred_check
          %p261 = pneg %p55
        $region34: #{tpu_custom_call.1} parent=31 // pred_check_branch
          %263 = sbr.rel (%p261) target = $region36
        $region35: #{tpu_custom_call.1} parent=31 // pred_region
          %264 = dma.done %s257, 768
        $region36: #{tpu_custom_call.1} parent=31 // pred_fallthru
          _
        %s265 = sand.u32 %s20, 1
        %s266 = scalar_lea.sflag [#allocation7], %s265
        %s267 = sand.u32 %s70, 1
        %s268 = smul.addr %s267, 48
        %s269 = scalar_lea.vmem [#allocation6], %s268
        // Predicated region
        $region37: #{tpu_custom_call.1} parent=31 // pred_check
          %p270 = pneg %p83
        $region38: #{tpu_custom_call.1} parent=31 // pred_check_branch
          %272 = sbr.rel (%p270) target = $region40
        $region39: #{tpu_custom_call.1} parent=31 // pred_region
          %273 = dma.done %s266, 768
        $region40: #{tpu_custom_call.1} parent=31 // pred_fallthru
          _
        %s274 = sand.u32 %s20, 1
        %s275 = scalar_lea.sflag [#allocation7], %s274
        %s276 = sand.u32 %s98, 1
        %s277 = smul.addr %s276, 48
        %s278 = scalar_lea.vmem [#allocation8], %s277
        // Predicated region
        $region41: #{tpu_custom_call.1} parent=31 // pred_check
          %p279 = pneg %p111
        $region42: #{tpu_custom_call.1} parent=31 // pred_check_branch
          %281 = sbr.rel (%p279) target = $region44
        $region43: #{tpu_custom_call.1} parent=31 // pred_region
          %282 = dma.done %s275, 768
        $region44: #{tpu_custom_call.1} parent=31 // pred_fallthru
          _
        %s283 = sand.u32 %s42, 1
        %s284 = scalar_lea.sflag [#allocation5], %s283
        %s285 = sand.u32 %s42, 1
        %s286 = smul.addr %s285, 48
        %s287 = scalar_lea.vmem [#allocation4], %s286
        %p288 = pneg %p55
        %p289 = pneg %p52
        %s290 = sand.u32 %s20, 1
        %s291 = scalar_lea.sflag [#allocation7], %s290
        %s292 = sand.u32 %s70, 1
        %s293 = smul.addr %s292, 48
        %s294 = scalar_lea.vmem [#allocation6], %s293
        %p295 = pneg %p83
        %p296 = pneg %p80
        %s297 = sand.u32 %s20, 1
        %s298 = scalar_lea.sflag [#allocation7], %s297
        %s299 = sand.u32 %s98, 1
        %s300 = smul.addr %s299, 48
        %s301 = scalar_lea.vmem [#allocation8], %s300
        %p302 = pneg %p111
        %p303 = pneg %p108
        %p304 = pneg %p137
        %p305 = pneg %p134
        %s306 = sand.u32 %s124, 1
        %s307 = sand.u32 %s124, 1
        %s308 = smul.addr %s307, 16
        %s309 = scalar_lea.vmem [#allocation9], %s308
        %s310 = smul.u32 2, %s24
        %s311 = smul.u32 3, %s25
        %s312 = ssub.s32 3, %s310
        %p313 = scmp.lt.s32.totalorder %s312, 2
        %s314 = scalar_select %p313, %s312, 2
        %s315 = smul.u32 128, %s314
        %s316 = smul.u32 %s315, 3
        %s317 = smul.u32 2, %s24
        %s318 = smul.u32 3, %s25
        %s319 = ssub.s32 3, %s317
        %p320 = scmp.lt.s32.totalorder %s319, 2
        %s321 = scalar_select %p320, %s319, 2
        %s322 = smul.u32 128, %s321
        %s323 = smul.u32 %s322, 3
        %s324 = smul.u32 2, %s24
        %s325 = smul.u32 3, %s25
        %s326 = ssub.s32 3, %s324
        %p327 = scmp.lt.s32.totalorder %s326, 2
        %s328 = scalar_select %p327, %s326, 2
        %s329 = smul.u32 128, %s328
        %s330 = smul.u32 %s329, 3
        %s331 = smul.u32 2, %s24
        %s332 = ssub.s32 3, %s331
        %p333 = scmp.lt.s32.totalorder %s332, 2
        %s334 = scalar_select %p333, %s332, 2
        %s335 = smul.u32 128, %s334
        %p336 = scmp.eq.s32.totalorder %s25, 0
        // Predicated region
        $region45: #{tpu_custom_call.1} parent=31 // pred_check
          %p337 = pneg %p336
        $region46: #{tpu_custom_call.1} parent=31 // pred_check_branch
          %339 = sbr.rel (%p337) target = $region48
        $region47: #{tpu_custom_call.1} parent=31 // pred_region
          %vm340 = vcmask 7168
          %341 = vst.msk [vmem:[#allocation2] sm:$0xff] %vm340, 0.0
          %342 = vst.msk [vmem:[#allocation2 + $0x8] sm:$0xff] %vm340, 0.0
          %343 = vst.msk [vmem:[#allocation3] sm:$0xff] %vm340, 0.0
          %344 = vst.msk [vmem:[#allocation3 + $0x8] sm:$0xff] %vm340, 0.0
        $region48: #{tpu_custom_call.1} parent=31 // pred_fallthru
          _
        %v345 = vld [vmem:[%s260] sm:$0xff]
        %v346 = vld [vmem:[%s260 + $0x8] sm:$0xff]
        %v347 = vld [vmem:[%s260 + $0x10] sm:$0xff]
        %v348 = vld [vmem:[%s260 + $0x18] sm:$0xff]
        %v349 = vld [vmem:[%s260 + $0x20] sm:$0xff]
        %v350 = vld [vmem:[%s260 + $0x28] sm:$0xff]
        %v351 = vld [vmem:[%s269] sm:$0xff]
        %v352 = vld [vmem:[%s269 + $0x8] sm:$0xff]
        %v353 = vld [vmem:[%s269 + $0x10] sm:$0xff]
        %v354 = vld [vmem:[%s269 + $0x18] sm:$0xff]
        %v355 = vld [vmem:[%s269 + $0x20] sm:$0xff]
        %v356 = vld [vmem:[%s269 + $0x28] sm:$0xff]
        %v357 = vld [vmem:[%s278] sm:$0xff]
        %v358 = vld [vmem:[%s278 + $0x8] sm:$0xff]
        %v359 = vld [vmem:[%s278 + $0x10] sm:$0xff]
        %v360 = vld [vmem:[%s278 + $0x18] sm:$0xff]
        %v361 = vld [vmem:[%s278 + $0x20] sm:$0xff]
        %v362 = vld [vmem:[%s278 + $0x28] sm:$0xff]
        %v363 = vmax.f32 %v345, 0.0
        %v364 = vmax.f32 %v346, 0.0
        %v365 = vmax.f32 %v347, 0.0
        %v366 = vmax.f32 %v348, 0.0
        %v367 = vmax.f32 %v349, 0.0
        %v368 = vmax.f32 %v350, 0.0
        %v369 = vmul.f32 %v345, %v351
        %v370 = vmul.f32 %v346, %v352
        %v371 = vmul.f32 %v347, %v353
        %v372 = vmul.f32 %v348, %v354
        %v373 = vmul.f32 %v349, %v355
        %v374 = vmul.f32 %v350, %v356
        %v375 = vsub.f32 %v363, %v369
        %v376 = vsub.f32 %v364, %v370
        %v377 = vsub.f32 %v365, %v371
        %v378 = vsub.f32 %v366, %v372
        %v379 = vsub.f32 %v367, %v373
        %v380 = vsub.f32 %v368, %v374
        %v381 = vand.u32 2147483647, %v345
        %v382 = vand.u32 2147483647, %v346
        %v383 = vand.u32 2147483647, %v347
        %v384 = vand.u32 2147483647, %v348
        %v385 = vand.u32 2147483647, %v349
        %v386 = vand.u32 2147483647, %v350
        %v387 = vsub.f32 0.0, %v381
        %v388 = vsub.f32 0.0, %v382
        %v389 = vsub.f32 0.0, %v383
        %v390 = vsub.f32 0.0, %v384
        %v391 = vsub.f32 0.0, %v385
        %v392 = vsub.f32 0.0, %v386
        %v393 = vmul.f32 %v387, 1.442695
        %v394 = vpow.pop %v393
        %v395 = vmul.f32 %v388, 1.442695
        %v396 = vpow.pop %v395
        %v397 = vmul.f32 %v389, 1.442695
        %v398 = vpow.pop %v397
        %v399 = vmul.f32 %v390, 1.442695
        %v400 = vpow.pop %v399
        %v401 = vmul.f32 %v391, 1.442695
        %v402 = vpow.pop %v401
        %v403 = vmul.f32 %v392, 1.442695
        %v404 = vpow.pop %v403
        %v405 = vadd.f32 %v394, 1.0
        %v406 = vlog2.pop %v405
        %v407 = vmul.f32 %v406, 0.6931472
        %v408 = vmul.f32 -0.5, %v394
        %v409 = vadd.f32 %v408, 1.0
        %v410 = vmul.f32 %v409, %v394
        %v411 = vand.u32 2147483647, %v394
        %vm412 = vcmp.lt.f32.partialorder %v411, 0.0004427343
        %v413 = vsel %vm412, %v410, %v407
        %v414 = vadd.f32 %v396, 1.0
        %v415 = vlog2.pop %v414
        %v416 = vmul.f32 %v415, 0.6931472
        %v417 = vmul.f32 -0.5, %v396
        %v418 = vadd.f32 %v417, 1.0
        %v419 = vmul.f32 %v418, %v396
        %v420 = vand.u32 2147483647, %v396
        %vm421 = vcmp.lt.f32.partialorder %v420, 0.0004427343
        %v422 = vsel %vm421, %v419, %v416
        %v423 = vadd.f32 %v398, 1.0
        %v424 = vlog2.pop %v423
        %v425 = vmul.f32 %v424, 0.6931472
        %v426 = vmul.f32 -0.5, %v398
        %v427 = vadd.f32 %v426, 1.0
        %v428 = vmul.f32 %v427, %v398
        %v429 = vand.u32 2147483647, %v398
        %vm430 = vcmp.lt.f32.partialorder %v429, 0.0004427343
        %v431 = vsel %vm430, %v428, %v425
        %v432 = vadd.f32 %v400, 1.0
        %v433 = vlog2.pop %v432
        %v434 = vmul.f32 %v433, 0.6931472
        %v435 = vmul.f32 -0.5, %v400
        %v436 = vadd.f32 %v435, 1.0
        %v437 = vmul.f32 %v436, %v400
        %v438 = vand.u32 2147483647, %v400
        %vm439 = vcmp.lt.f32.partialorder %v438, 0.0004427343
        %v440 = vsel %vm439, %v437, %v434
        %v441 = vadd.f32 %v402, 1.0
        %v442 = vlog2.pop %v441
        %v443 = vmul.f32 %v442, 0.6931472
        %v444 = vmul.f32 -0.5, %v402
        %v445 = vadd.f32 %v444, 1.0
        %v446 = vmul.f32 %v445, %v402
        %v447 = vand.u32 2147483647, %v402
        %vm448 = vcmp.lt.f32.partialorder %v447, 0.0004427343
        %v449 = vsel %vm448, %v446, %v443
        %v450 = vadd.f32 %v404, 1.0
        %v451 = vlog2.pop %v450
        %v452 = vmul.f32 %v451, 0.6931472
        %v453 = vmul.f32 -0.5, %v404
        %v454 = vadd.f32 %v453, 1.0
        %v455 = vmul.f32 %v454, %v404
        %v456 = vand.u32 2147483647, %v404
        %vm457 = vcmp.lt.f32.partialorder %v456, 0.0004427343
        %v458 = vsel %vm457, %v455, %v452
        %v459 = vadd.f32 %v375, %v413
        %v460 = vadd.f32 %v376, %v422
        %v461 = vadd.f32 %v377, %v431
        %v462 = vadd.f32 %v378, %v440
        %v463 = vadd.f32 %v379, %v449
        %v464 = vadd.f32 %v380, %v458
        %v465 = vmul.f32 %v357, %v459
        %v466 = vmul.f32 %v358, %v460
        %v467 = vmul.f32 %v359, %v461
        %v468 = vmul.f32 %v360, %v462
        %v469 = vmul.f32 %v361, %v463
        %v470 = vmul.f32 %v362, %v464
        %v471 = vld [vmem:[#allocation2] sm:$0xff]
        %v472 = vld [vmem:[#allocation2 + $0x8] sm:$0xff]
        %v473 = vadd.f32 %v465, %v466
        %vm474 = vcmask 359424
        %v475 = vsel %vm474, %v467, 0.0
        %v476 = vadd.f32 %v473, %v475
        %477 = vadd.xlane.f32.xlu0 %v476
        %v478 = vpop.xlane.xlu0 %477
        %v479 = vadd.f32 %v468, %v469
        %v480 = vsel %vm474, %v470, 0.0
        %v481 = vadd.f32 %v479, %v480
        %482 = vadd.xlane.f32.xlu0 %v481
        %v483 = vpop.xlane.xlu0 %482
        %v484 = vadd.f32 %v471, %v478
        %v485 = vadd.f32 %v472, %v483
        %vm486 = vcmask 7168
        %487 = vst.msk [vmem:[#allocation2] sm:$0xff] %vm486, %v484
        %488 = vst.msk [vmem:[#allocation2 + $0x8] sm:$0xff] %vm486, %v485
        %v489 = vld [vmem:[#allocation3] sm:$0xff]
        %v490 = vld [vmem:[#allocation3 + $0x8] sm:$0xff]
        %v491 = vadd.f32 %v357, %v358
        %v492 = vsel %vm474, %v359, 0.0
        %v493 = vadd.f32 %v491, %v492
        %494 = vadd.xlane.f32.xlu0 %v493
        %v495 = vpop.xlane.xlu0 %494
        %v496 = vadd.f32 %v360, %v361
        %v497 = vsel %vm474, %v362, 0.0
        %v498 = vadd.f32 %v496, %v497
        %499 = vadd.xlane.f32.xlu0 %v498
        %v500 = vpop.xlane.xlu0 %499
        %v501 = vadd.f32 %v489, %v495
        %v502 = vadd.f32 %v490, %v500
        %503 = vst.msk [vmem:[#allocation3] sm:$0xff] %vm486, %v501
        %504 = vst.msk [vmem:[#allocation3 + $0x8] sm:$0xff] %vm486, %v502
        // Predicated region
        $region49: #{tpu_custom_call.1} parent=31 // pred_check
          %p505 = pneg %p336
        $region50: #{tpu_custom_call.1} parent=31 // pred_check_branch
          %507 = sbr.rel (%p505) target = $region52
        $region51: #{tpu_custom_call.1} parent=31 // pred_region
          %v508 = vld [vmem:[#allocation2] sm:$0xff]
          %v509 = vld [vmem:[#allocation2 + $0x8] sm:$0xff]
          %v510 = vld [vmem:[#allocation3] sm:$0xff]
          %v511 = vld [vmem:[#allocation3 + $0x8] sm:$0xff]
          %v512 = vrcp.pop %v510
          %v513 = vmul.f32 %v508, %v512
          %v514 = vrcp.pop %v511
          %v515 = vmul.f32 %v509, %v514
          %516 = vst.msk [vmem:[%s309] sm:$0xff] %vm486, %v513
          %517 = vst.msk [vmem:[%s309 + $0x8] sm:$0xff] %vm486, %v515
        $region52: #{tpu_custom_call.1} parent=31 // pred_fallthru
          _
        %s518 = sand.u32 %s124, 1
        %s519 = sand.u32 %s124, 1
        %s520 = smul.addr %s519, 16
        %s521 = scalar_lea.vmem [#allocation9], %s520
        // Predicated region
        $region53: #{tpu_custom_call.1} parent=31 // pred_check
          %p522 = pneg %p134
        $region54: #{tpu_custom_call.1} parent=31 // pred_check_branch
          %524 = sbr.rel (%p522) target = $region56
        $region55: #{tpu_custom_call.1} parent=31 // pred_region
          %s525 = smul.u32 2, %s24
          %s526 = ssub.s32 3, %s525
          %p527 = scmp.lt.s32.totalorder %s526, 2
          %s528 = scalar_select %p527, %s526, 2
          %s529 = smul.u32 128, %s528
          %p530 = scmp.ne.s32.totalorder 0, %s529
          %s531 = smul.addr %s525, 8
          %s532 = scalar_lea.vmem %s3, %s531
          // Predicated region
          $region57: #{tpu_custom_call.1} parent=55 // pred_check
            %p533 = pneg %p530
          $region58: #{tpu_custom_call.1} parent=55 // pred_check_branch
            %535 = sbr.rel (%p533) target = $region60
          $region59: #{tpu_custom_call.1} parent=55 // pred_region
            // Predicated region
            $region61: #{tpu_custom_call.1} parent=59 // pred_check
              _
            $region62: #{tpu_custom_call.1} parent=59 // pred_check_branch
              %537 = sbr.rel (0) target = $region64
            $region63: #{tpu_custom_call.1} parent=59 // pred_region
              // Predicated region
              $region83: #{tpu_custom_call.1} parent=63 // pred_check
                _
              $region84: #{tpu_custom_call.1} parent=63 // pred_check_branch
                %588 = sbr.rel (0) target = $region86
              $region85: #{tpu_custom_call.1} parent=63 // pred_region
                %s589 = sshrl.u32 %s528, 1
                // While loop
                $region87: #{tpu_custom_call.1} parent=85 // loop_pre_header
                  _
                $region88: #{tpu_custom_call.1} parent=85 // loop_header
                  %s591 = sphi 0, %s593
                  %p592 = scmp.ge.s32.totalorder %s591, %s589
                  %s596 = sphi 0, %s605
                  %s597 = sphi %s521, %s608
                  %s598 = sphi %s532, %s609
                $region89: #{tpu_custom_call.1} parent=85 // loop_header_branch
                  %595 = sbr.rel (%p592) target = $region93
                $region90: #{tpu_custom_call.1} parent=85 // loop_body
                  %v599 = vld [vmem:[%s597] sm:$0xff]
                  %600 = vst [vmem:[%s598] sm:$0xff] %v599
                  %v601 = vld [vmem:[%s597 + $0x8] sm:$0xff]
                  %602 = vst [vmem:[%s598 + $0x8] sm:$0xff] %v601
                  %s603 = sadd.s32 1, %s596
                  %p604 = scmp.ge.s32.totalorder %s603, %s589
                  %s605 = scalar_select %p604, 0, %s603
                  %s606 = smul.u32 %s605, 16
                  %s607 = smul.u32 %s605, 16
                  %s608 = scalar_lea.vmem %s521, %s606 [#allocation9]
                  %s609 = scalar_lea.vmem %s532, %s607
                $region91: #{tpu_custom_call.1} parent=85 // loop_footer
                  %s593 = sadd.s32 %s591, 1
                $region92: #{tpu_custom_call.1} parent=85 // loop_footer_branch
                  %590 = sbr.rel target = $region88
                $region93: #{tpu_custom_call.1} parent=85 // loop_exit
                  _
                %s610 = sshrl.u32 %s528, 1
                %s611 = sand.u32 %s528, 1
                %s612 = smul.u32 %s610, 2
                %s613 = smul.u32 8, %s612
                %s614 = scalar_lea.vmem %s521, %s613 [#allocation9]
                %s615 = smul.u32 8, %s612
                %s616 = scalar_lea.vmem %s532, %s615
                // While loop
                $region94: #{tpu_custom_call.1} parent=85 // loop_pre_header
                  _
                $region95: #{tpu_custom_call.1} parent=85 // loop_header
                  %s618 = sphi 0, %s620
                  %p619 = scmp.ge.s32.totalorder %s618, %s611
                  %s623 = sphi 0, %s630
                  %s624 = sphi %s614, %s633
                  %s625 = sphi %s616, %s634
                $region96: #{tpu_custom_call.1} parent=85 // loop_header_branch
                  %622 = sbr.rel (%p619) target = $region100
                $region97: #{tpu_custom_call.1} parent=85 // loop_body
                  %v626 = vld [vmem:[%s624] sm:$0xff]
                  %627 = vst [vmem:[%s625] sm:$0xff] %v626
                  %s628 = sadd.s32 1, %s623
                  %p629 = scmp.ge.s32.totalorder %s628, %s611
                  %s630 = scalar_select %p629, 0, %s628
                  %s631 = smul.u32 %s630, 8
                  %s632 = smul.u32 %s630, 8
                  %s633 = scalar_lea.vmem %s614, %s631 [#allocation9]
                  %s634 = scalar_lea.vmem %s616, %s632
                $region98: #{tpu_custom_call.1} parent=85 // loop_footer
                  %s620 = sadd.s32 %s618, 1
                $region99: #{tpu_custom_call.1} parent=85 // loop_footer_branch
                  %617 = sbr.rel target = $region95
                $region100: #{tpu_custom_call.1} parent=85 // loop_exit
                  _
              $region86: #{tpu_custom_call.1} parent=63 // pred_fallthru
                _
              // Predicated region
              $region101: #{tpu_custom_call.1} parent=63 // pred_check
                _
              $region102: #{tpu_custom_call.1} parent=63 // pred_check_branch
                %636 = sbr.rel target = $region104
              $region103: #{tpu_custom_call.1} parent=63 // pred_region
                _
              $region104: #{tpu_custom_call.1} parent=63 // pred_fallthru
                _
            $region64: #{tpu_custom_call.1} parent=59 // pred_fallthru
              _
            // Predicated region
            $region65: #{tpu_custom_call.1} parent=59 // pred_check
              _
            $region66: #{tpu_custom_call.1} parent=59 // pred_check_branch
              %539 = sbr.rel target = $region68
            $region67: #{tpu_custom_call.1} parent=59 // pred_region
              %s541 = sshrl.u32 %s528, 1
              // While loop
              $region69: #{tpu_custom_call.1} parent=67 // loop_pre_header
                _
              $region70: #{tpu_custom_call.1} parent=67 // loop_header
                %s543 = sphi 0, %s545
                %p544 = scmp.ge.s32.totalorder %s543, %s541
                %s548 = sphi 0, %s557
                %s549 = sphi %s521, %s560
                %s550 = sphi %s532, %s561
              $region71: #{tpu_custom_call.1} parent=67 // loop_header_branch
                %547 = sbr.rel (%p544) target = $region75
              $region72: #{tpu_custom_call.1} parent=67 // loop_body
                %v551 = vld [vmem:[%s549] sm:$0xff]
                %552 = vst [vmem:[%s550] sm:$0xff] %v551
                %v553 = vld [vmem:[%s549 + $0x8] sm:$0xff]
                %554 = vst [vmem:[%s550 + $0x8] sm:$0xff] %v553
                %s555 = sadd.s32 1, %s548
                %p556 = scmp.ge.s32.totalorder %s555, %s541
                %s557 = scalar_select %p556, 0, %s555
                %s558 = smul.u32 %s557, 16
                %s559 = smul.u32 %s557, 16
                %s560 = scalar_lea.vmem %s521, %s558 [#allocation9]
                %s561 = scalar_lea.vmem %s532, %s559
              $region73: #{tpu_custom_call.1} parent=67 // loop_footer
                %s545 = sadd.s32 %s543, 1
              $region74: #{tpu_custom_call.1} parent=67 // loop_footer_branch
                %542 = sbr.rel target = $region70
              $region75: #{tpu_custom_call.1} parent=67 // loop_exit
                _
              %s562 = sshrl.u32 %s528, 1
              %s563 = sand.u32 %s528, 1
              %s564 = smul.u32 %s562, 2
              %s565 = smul.u32 8, %s564
              %s566 = scalar_lea.vmem %s521, %s565 [#allocation9]
              %s567 = smul.u32 8, %s564
              %s568 = scalar_lea.vmem %s532, %s567
              // While loop
              $region76: #{tpu_custom_call.1} parent=67 // loop_pre_header
                _
              $region77: #{tpu_custom_call.1} parent=67 // loop_header
                %s570 = sphi 0, %s572
                %p571 = scmp.ge.s32.totalorder %s570, %s563
                %s575 = sphi 0, %s582
                %s576 = sphi %s566, %s585
                %s577 = sphi %s568, %s586
              $region78: #{tpu_custom_call.1} parent=67 // loop_header_branch
                %574 = sbr.rel (%p571) target = $region82
              $region79: #{tpu_custom_call.1} parent=67 // loop_body
                %v578 = vld [vmem:[%s576] sm:$0xff]
                %579 = vst [vmem:[%s577] sm:$0xff] %v578
                %s580 = sadd.s32 1, %s575
                %p581 = scmp.ge.s32.totalorder %s580, %s563
                %s582 = scalar_select %p581, 0, %s580
                %s583 = smul.u32 %s582, 8
                %s584 = smul.u32 %s582, 8
                %s585 = scalar_lea.vmem %s566, %s583 [#allocation9]
                %s586 = scalar_lea.vmem %s568, %s584
              $region80: #{tpu_custom_call.1} parent=67 // loop_footer
                %s572 = sadd.s32 %s570, 1
              $region81: #{tpu_custom_call.1} parent=67 // loop_footer_branch
                %569 = sbr.rel target = $region77
              $region82: #{tpu_custom_call.1} parent=67 // loop_exit
                _
            $region68: #{tpu_custom_call.1} parent=59 // pred_fallthru
              _
          $region60: #{tpu_custom_call.1} parent=55 // pred_fallthru
            _
          %637 = vnop
        $region56: #{tpu_custom_call.1} parent=31 // pred_fallthru
          _
      $region32: #{tpu_custom_call.1} parent=5 // pred_fallthru
        _
      %p638 = scmp.le.s32.totalorder 2, %s15
      // Predicated region
      $region105: #{tpu_custom_call.1} parent=5 // pred_check
        %p639 = pneg %p638
      $region106: #{tpu_custom_call.1} parent=5 // pred_check_branch
        %641 = sbr.rel (%p639) target = $region108
      $region107: #{tpu_custom_call.1} parent=5 // pred_region
        %s642 = ssub.s32 %s15, 2
        // Predicated region
        $region109: #{tpu_custom_call.1} parent=107 // pred_check
          %p643 = pneg %p140
        $region110: #{tpu_custom_call.1} parent=107 // pred_check_branch
          %645 = sbr.rel (%p643) target = $region112
        $region111: #{tpu_custom_call.1} parent=107 // pred_region
          %s646 = sand.u32 %s125, 1
          %s647 = sand.u32 %s125, 1
          %s648 = smul.addr %s647, 16
          %s649 = scalar_lea.vmem [#allocation9], %s648
        $region112: #{tpu_custom_call.1} parent=107 // pred_fallthru
          _
      $region108: #{tpu_custom_call.1} parent=5 // pred_fallthru
        _
    $region6: #{tpu_custom_call.1} parent=1 // loop_footer
      %s19 = sadd.s32 1, %s15
    $region7: #{tpu_custom_call.1} parent=1 // loop_footer_branch
      %14 = sbr.rel target = $region3
    $region8: #{tpu_custom_call.1} parent=1 // loop_exit
      _
    %650 = vsyncpa [#allocation5], 1
    %s651 = scalar_lea.sflag [#allocation5], 1
    %652 = vsyncpa %s651, 1
    %653 = vsyncpa [#allocation7], 1
    %s654 = scalar_lea.sflag [#allocation7], 1
    %655 = vsyncpa %s654, 1

</llo_original>
